<compile_context>
chip_gen: v7x
topology: tpu7x:2x2x1
jax: 0.10.0
libtpu: 0.0.40
codegen_flags: <defaults>
</compile_context>

<pallas_src>
import functools

import jax
import jax.numpy as jnp
from jax.experimental import pallas as pl
from jax.experimental.pallas import tpu as pltpu


def _round_up(n: int, m: int) -> int:
    return ((n + m - 1) // m) * m


def _qnet_kernel(x_ref, p_ref, o_ref, *, i_pad, h_pad, o_pad):
    # Static, tile-aligned views into the single packed parameter slab.
    w1 = p_ref[0:i_pad, 0:h_pad]                                   # [I_pad, H_pad]
    b1 = p_ref[i_pad:i_pad + 1, 0:h_pad]                           # [1, H_pad]
    w2_row0 = i_pad + 8
    w2 = p_ref[w2_row0:w2_row0 + h_pad, 0:o_pad]                   # [H_pad, O_pad]
    b2 = p_ref[w2_row0 + h_pad:w2_row0 + h_pad + 1, 0:o_pad]       # [1, O_pad]

    # fc1: [B_pad, I_pad] @ [I_pad, H_pad] + b1, then ReLU.
    h = jnp.dot(x_ref[...], w1, preferred_element_type=jnp.float32) + b1
    h = jnp.maximum(h, 0.0)
    # fc2: [B_pad, H_pad] @ [H_pad, O_pad] + b2.
    out = jnp.dot(h, w2, preferred_element_type=jnp.float32) + b2
    o_ref[...] = out.astype(o_ref.dtype)


def pack_params(w1, b1, w2, b2):
    """Pack all parameters into a single padded f32 slab (done once, not per call).

    Layout (rows):
      [0,              I_pad)            : w1  (valid [I, H])
      [I_pad,          I_pad+8)          : b1  (row I_pad, valid [1, H])
      [I_pad+8,        I_pad+8+H_pad)    : w2  (valid [H, O])
      [I_pad+8+H_pad,  I_pad+16+H_pad)   : b2  (row I_pad+8+H_pad, valid [1, O])
    All row-block offsets are multiples of 8; width is a multiple of 128.
    """
    in_dim, hidden_dim = w1.shape
    out_dim = w2.shape[1]
    i_pad = _round_up(in_dim, 8)
    h_pad = _round_up(hidden_dim, 128)
    o_pad = _round_up(out_dim, 128)
    width = max(h_pad, o_pad)
    rows = i_pad + 8 + h_pad + 8

    slab = jnp.zeros((rows, width), jnp.float32)
    slab = slab.at[:in_dim, :hidden_dim].set(w1.astype(jnp.float32))
    slab = slab.at[i_pad, :hidden_dim].set(b1.reshape(hidden_dim).astype(jnp.float32))
    slab = slab.at[i_pad + 8:i_pad + 8 + hidden_dim, :out_dim].set(w2.astype(jnp.float32))
    slab = slab.at[i_pad + 8 + h_pad, :out_dim].set(b2.reshape(out_dim).astype(jnp.float32))

    dims = (in_dim, hidden_dim, out_dim, i_pad, h_pad, o_pad)
    return slab, dims


@functools.partial(jax.jit, static_argnames=("dims",))
def linear_qnet_forward(x, param_slab, dims):
    """Forward pass equivalent to Linear_QNet.forward: fc2(relu(fc1(x)))."""
    in_dim, _, out_dim, i_pad, h_pad, o_pad = dims
    batch = x.shape[0]
    b_pad = _round_up(batch, 8)

    # Zero-pad activations to (8, lane)-friendly tiles; padding columns/rows
    # contribute exactly zero to the valid outputs and are sliced off below.
    x_pad = jnp.zeros((b_pad, i_pad), jnp.float32).at[:batch, :in_dim].set(
        x.astype(jnp.float32))

    kernel = functools.partial(_qnet_kernel, i_pad=i_pad, h_pad=h_pad, o_pad=o_pad)
    out_pad = pl.pallas_call(
        kernel,
        out_shape=jax.ShapeDtypeStruct((b_pad, o_pad), jnp.float32),
        in_specs=[
            pl.BlockSpec(memory_space=pltpu.MemorySpace.VMEM),
            pl.BlockSpec(memory_space=pltpu.MemorySpace.VMEM),
        ],
        out_specs=pl.BlockSpec(memory_space=pltpu.MemorySpace.VMEM),
    )(x_pad, param_slab)

    # TODO(synk): for large replay-buffer minibatches, switch to a batch-tiled
    # grid (parallel axis) so v7x's second TensorCore is used; at B=2 a grid is
    # pure overhead.
    return out_pad[:batch, :out_dim]


def init_params(key, input_dim, hidden_dim, output_dim):
    """Deterministic init mimicking nn.Linear (uniform(-1/sqrt(fan_in), 1/sqrt(fan_in)))."""
    k1, k2, k3, k4 = jax.random.split(key, 4)
    lim1 = 1.0 / jnp.sqrt(input_dim)
    lim2 = 1.0 / jnp.sqrt(hidden_dim)
    # Stored as [in, out] (transpose of PyTorch's [out, in]); math is identical.
    w1 = jax.random.uniform(k1, (input_dim, hidden_dim), jnp.float32, -lim1, lim1)
    b1 = jax.random.uniform(k2, (1, hidden_dim), jnp.float32, -lim1, lim1)
    w2 = jax.random.uniform(k3, (hidden_dim, output_dim), jnp.float32, -lim2, lim2)
    b2 = jax.random.uniform(k4, (1, output_dim), jnp.float32, -lim2, lim2)
    return w1, b1, w2, b2


if __name__ == "__main__":
    # Snake-game-like dims: 11 state features, 32 hidden, 3 actions.
    batch, input_dim, hidden_dim, output_dim = 2, 11, 32, 3

    key = jax.random.PRNGKey(0)
    kx, kp = jax.random.split(key)
    x = jax.random.normal(kx, (batch, input_dim), jnp.float32)
    w1, b1, w2, b2 = init_params(kp, input_dim, hidden_dim, output_dim)

    # Pack parameters once (outside the per-call path); reuse slab every call.
    param_slab, dims = pack_params(w1, b1, w2, b2)
    param_slab = jax.block_until_ready(param_slab)

    out = linear_qnet_forward(x, param_slab, dims)
    out = jax.block_until_ready(out)

    # Reference check in plain JAX (same math as PyTorch forward).
    ref = jnp.maximum(x @ w1 + b1, 0.0) @ w2 + b2
    assert out.shape == (batch, output_dim)
    assert jnp.allclose(out, ref, atol=1e-5, rtol=1e-5)

    print("KERNEL_OK")
</pallas_src>

<mosaic_0001>
module attributes {stable_mosaic.version = 11 : i64} {
  func.func @_qnet_kernel(%arg0: memref<8x16xf32, #tpu.memory_space<vmem>>, %arg1: memref<160x128xf32, #tpu.memory_space<vmem>>, %arg2: memref<8x128xf32, #tpu.memory_space<vmem>>) attributes {dimension_semantics = [], scalar_prefetch = 0 : i64, scratch_operands = 0 : i64, tpu.core_type = #tpu.core_type<tc>} {
    %c0 = arith.constant 0 : index
    %c0_0 = arith.constant 0 : index
    %0 = vector.load %arg1[%c0, %c0_0] : memref<160x128xf32, #tpu.memory_space<vmem>>, vector<16x128xf32>
    %c16 = arith.constant 16 : index
    %c0_1 = arith.constant 0 : index
    %1 = vector.load %arg1[%c16, %c0_1] : memref<160x128xf32, #tpu.memory_space<vmem>>, vector<1x128xf32>
    %c24 = arith.constant 24 : index
    %c0_2 = arith.constant 0 : index
    %2 = vector.load %arg1[%c24, %c0_2] : memref<160x128xf32, #tpu.memory_space<vmem>>, vector<128x128xf32>
    %c152 = arith.constant 152 : index
    %c0_3 = arith.constant 0 : index
    %3 = vector.load %arg1[%c152, %c0_3] : memref<160x128xf32, #tpu.memory_space<vmem>>, vector<1x128xf32>
    %c0_4 = arith.constant 0 : index
    %c0_5 = arith.constant 0 : index
    %4 = vector.load %arg0[%c0_4, %c0_5] : memref<8x16xf32, #tpu.memory_space<vmem>>, vector<8x16xf32>
    %cst = arith.constant dense<0.000000e+00> : vector<8x128xf32>
    %5 = tpu.matmul %4, %0, %cst {dimension_numbers = #tpu.dot_dimension_numbers<[1], [0], [0], [1], [0, 0, 1, 1], [], []>} : vector<8x16xf32>, vector<16x128xf32>, vector<8x128xf32> -> vector<8x128xf32>
    %6 = vector.broadcast %1 : vector<1x128xf32> to vector<8x128xf32>
    %7 = arith.addf %5, %6 : vector<8x128xf32>
    %cst_6 = arith.constant 0.000000e+00 : f32
    %8 = vector.broadcast %cst_6 : f32 to vector<8x128xf32>
    %9 = arith.maximumf %7, %8 : vector<8x128xf32>
    %cst_7 = arith.constant dense<0.000000e+00> : vector<8x128xf32>
    %10 = tpu.matmul %9, %2, %cst_7 {dimension_numbers = #tpu.dot_dimension_numbers<[1], [0], [0], [1], [0, 0, 1, 1], [], []>} : vector<8x128xf32>, vector<128x128xf32>, vector<8x128xf32> -> vector<8x128xf32>
    %11 = vector.broadcast %3 : vector<1x128xf32> to vector<8x128xf32>
    %12 = arith.addf %10, %11 : vector<8x128xf32>
    %c0_8 = arith.constant 0 : index
    %c0_9 = arith.constant 0 : index
    %13 = vector.load %arg2[%c0_8, %c0_9] : memref<8x128xf32, #tpu.memory_space<vmem>>, vector<8x128xf32>
    tpu.vector_store %arg2[%c0_8, %c0_9], %12 {strides = array<i32>} : memref<8x128xf32, #tpu.memory_space<vmem>>, vector<8x128xf32>,
    return
  }
}

</mosaic_0001>

<llo_original>
// kernel: linear_qnet_forward.1
$region0: #{linear_qnet_forward.1}
  #allocation0 [shape = 'u32[]', space=smem, size = 0x4, offset = 0x4, fixed_abs, tag = 'smem constant byte address 0x4 - core index']
  #allocation1 [shape = 'u32[144,128]{1,0:T(1,128)}', space=vmem, size = 0x12000, scoped, tag = 'internal scratch']
  %s0 = inlined_call_operand.vmem [shape: f32[8,16], index: 0, kind: input, shape index: {}]
  %s1 = inlined_call_operand.hbm [shape: f32[160,128], index: 1, kind: input, shape index: {}]
  %s2 = inlined_call_operand.vmem [shape: f32[8,128], index: 2, kind: output, shape index: {}]
  %s3 = sld [smem:[#allocation0]]
  $region22: #{linear_qnet_forward.1} parent=0
    _
  %s5 = ssub.s32 1, %s3
  %s6 = scalar_select 0, %s5, %s3
  $region1: #{linear_qnet_forward.1} parent=0
    #allocation2 [shape = 'u8[81920]{0}', space=vmem, size = 0x14000, scoped, tag = 'input window, operand 1, single buffered']
    #allocation3 [shape = 's32[1]{0}', space=sflag, size = 0x4, scoped, tag = 'scoped memory for linear_qnet_forward.1']
    %7 = vsyncpa [#allocation3], 0
    // Predicated region
    $region2: #{linear_qnet_forward.1} parent=1 // pred_check
      _
    $region3: #{linear_qnet_forward.1} parent=1 // pred_check_branch
      %9 = sbr.rel (0) target = $region5
    $region4: #{linear_qnet_forward.1} parent=1 // pred_region
      _
    $region5: #{linear_qnet_forward.1} parent=1 // pred_fallthru
      _
    // Predicated region
    $region6: #{linear_qnet_forward.1} parent=1 // pred_check
      _
    $region7: #{linear_qnet_forward.1} parent=1 // pred_check_branch
      %11 = sbr.rel (0) target = $region9
    $region8: #{linear_qnet_forward.1} parent=1 // pred_region
      %s13 = ssub.s32 2560, 2560
      %14 = vsyncadd [#allocation3], %s13
      %s15 = sshll.u32 [#allocation2], 4
      %s16 = int_to_ptr.vmem [resolvable:$true] %s15
      %21 = dma.hbm_to_vmem [thread:$0]  %s1, 2560, %s16, [#allocation3], 128, 128, 8
    $region9: #{linear_qnet_forward.1} parent=1 // pred_fallthru
      _
    // Predicated region
    $region10: #{linear_qnet_forward.1} parent=1 // pred_check
      _
    $region11: #{linear_qnet_forward.1} parent=1 // pred_check_branch
      %23 = sbr.rel (0) target = $region13
    $region12: #{linear_qnet_forward.1} parent=1 // pred_region
      %24 = dma.done [#allocation3], 2560
    $region13: #{linear_qnet_forward.1} parent=1 // pred_fallthru
      _
    %v25 = vld [vmem:[#allocation2] sm:$0xff]
    %v26 = vld [vmem:[#allocation2 + $0x8] sm:$0xff]
    %v27 = vld [vmem:[#allocation2 + $0x10] sm:$0x1]
    %v28 = vld [vmem:[#allocation2 + $0x18] sm:$0xff]
    %v29 = vld [vmem:[#allocation2 + $0x20] sm:$0xff]
    %v30 = vld [vmem:[#allocation2 + $0x28] sm:$0xff]
    %v31 = vld [vmem:[#allocation2 + $0x30] sm:$0xff]
    %v32 = vld [vmem:[#allocation2 + $0x38] sm:$0xff]
    %v33 = vld [vmem:[#allocation2 + $0x40] sm:$0xff]
    %v34 = vld [vmem:[#allocation2 + $0x48] sm:$0xff]
    %v35 = vld [vmem:[#allocation2 + $0x50] sm:$0xff]
    %v36 = vld [vmem:[#allocation2 + $0x58] sm:$0xff]
    %v37 = vld [vmem:[#allocation2 + $0x60] sm:$0xff]
    %v38 = vld [vmem:[#allocation2 + $0x68] sm:$0xff]
    %v39 = vld [vmem:[#allocation2 + $0x70] sm:$0xff]
    %v40 = vld [vmem:[#allocation2 + $0x78] sm:$0xff]
    %v41 = vld [vmem:[#allocation2 + $0x80] sm:$0xff]
    %v42 = vld [vmem:[#allocation2 + $0x88] sm:$0xff]
    %v43 = vld [vmem:[#allocation2 + $0x90] sm:$0xff]
    %v44 = vld [vmem:[#allocation2 + $0x98] sm:$0x1]
    %v45 = vld [vmem:[%s0] sm:$0xff]
    %v46 = vlaneseq
    %v47 = vshrl.u32 %v46, 7
    %v48 = vsub.s32 0, %v47
    %v49 = vrot.slane %v27, %v48
    %vm50 = vcmask 130048
    %v52 = vsel %vm50, %v45, 0
    %54 = vmatprep.subr.mxu0 0.0
    %55 = vmatpush1.msra.mxu0 %v25
    %56 = vmatprep.subr.mxu0 0.0
    %57 = vmatpush1.msra.mxu0 %v26
    %58 = vmatprep.subr.mxu0 0.0
    %59 = vmatpush1.msra.mxu0 0.0
    %60 = vmatprep.subr.mxu0 0.0
    %61 = vmatpush1.msra.mxu0 0.0
    %62 = vmatprep.subr.mxu0 0.0
    %63 = vmatpush1.msra.mxu0 0.0
    %64 = vmatprep.subr.mxu0 0.0
    %65 = vmatpush1.msra.mxu0 0.0
    %66 = vmatprep.subr.mxu0 0.0
    %67 = vmatpush1.msra.mxu0 0.0
    %68 = vmatprep.subr.mxu0 0.0
    %69 = vmatpush1.msra.mxu0 0.0
    %70 = vmatprep.subr.mxu0 0.0
    %71 = vmatpush1.msra.mxu0 0.0
    %72 = vmatprep.subr.mxu0 0.0
    %73 = vmatpush1.msra.mxu0 0.0
    %74 = vmatprep.subr.mxu0 0.0
    %75 = vmatpush1.msra.mxu0 0.0
    %76 = vmatprep.subr.mxu0 0.0
    %77 = vmatpush1.msra.mxu0 0.0
    %78 = vmatprep.subr.mxu0 0.0
    %79 = vmatpush1.msra.mxu0 0.0
    %80 = vmatprep.subr.mxu0 0.0
    %81 = vmatpush1.msra.mxu0 0.0
    %82 = vmatprep.subr.mxu0 0.0
    %83 = vmatpush1.msra.mxu0 0.0
    %84 = vmatprep.subr.mxu0 0.0
    %85 = vmatpush1.msra.mxu0 0.0
    %86 = vmatprep.subr.mxu0 0.0
    %87 = vmatpush1.msra.mxu0 0.0
    %88 = vmatprep.subr.mxu0 0.0
    %89 = vmatpush1.msra.mxu0 0.0
    %90 = vmatprep.subr.mxu0 0.0
    %91 = vmatpush1.msra.mxu0 0.0
    %92 = vmatprep.subr.mxu0 0.0
    %93 = vmatpush1.msra.mxu0 0.0
    %94 = vmatprep.subr.mxu0 0.0
    %95 = vmatpush1.msra.mxu0 0.0
    %96 = vmatprep.subr.mxu0 0.0
    %97 = vmatpush1.msra.mxu0 0.0
    %98 = vmatprep.subr.mxu0 0.0
    %99 = vmatpush1.msra.mxu0 0.0
    %100 = vmatprep.subr.mxu0 0.0
    %101 = vmatpush1.msra.mxu0 0.0
    %102 = vmatprep.subr.mxu0 0.0
    %103 = vmatpush1.msra.mxu0 0.0
    %104 = vmatprep.subr.mxu0 0.0
    %105 = vmatpush1.msra.mxu0 0.0
    %106 = vmatprep.subr.mxu0 0.0
    %107 = vmatpush1.msra.mxu0 0.0
    %108 = vmatprep.subr.mxu0 0.0
    %109 = vmatpush1.msra.mxu0 0.0
    %110 = vmatprep.subr.mxu0 0.0
    %111 = vmatpush1.msra.mxu0 0.0
    %112 = vmatprep.subr.mxu0 0.0
    %113 = vmatpush1.msra.mxu0 0.0
    %114 = vmatprep.subr.mxu0 0.0
    %115 = vmatpush1.msra.mxu0 0.0
    %116 = vmatprep.subr.mxu0 0.0
    %117 = vmatpush1.msra.mxu0 0.0
    %118 = vmatprep.mubr.f32.mxu0 0.0
    %119 = vmatmul.mubr.f32.gmra.mrb[0].mxu0 %v52
    %v120 = vpop.f32.mrb[0].mxu0
    %v121 = vadd.f32 %v49, %v120
    %v122 = vpop.f32.mrb[0].mxu0
    %123 = vdwg.mxu0
    %v124 = vmax.f32 %v121, 0.0
    %v125 = vlaneseq
    %v126 = vshrl.u32 %v125, 7
    %v127 = vsub.s32 0, %v126
    %v128 = vrot.slane %v44, %v127
    %129 = vmatprep.subr.mxu0 0.0
    %130 = vmatpush1.msra.mxu0 %v28
    %131 = vmatprep.subr.mxu0 0.0
    %132 = vmatpush1.msra.mxu0 %v29
    %133 = vmatprep.subr.mxu0 0.0
    %134 = vmatpush1.msra.mxu0 %v30
    %135 = vmatprep.subr.mxu0 0.0
    %136 = vmatpush1.msra.mxu0 %v31
    %137 = vmatprep.subr.mxu0 0.0
    %138 = vmatpush1.msra.mxu0 %v32
    %139 = vmatprep.subr.mxu0 0.0
    %140 = vmatpush1.msra.mxu0 %v33
    %141 = vmatprep.subr.mxu0 0.0
    %142 = vmatpush1.msra.mxu0 %v34
    %143 = vmatprep.subr.mxu0 0.0
    %144 = vmatpush1.msra.mxu0 %v35
    %145 = vmatprep.subr.mxu0 0.0
    %146 = vmatpush1.msra.mxu0 %v36
    %147 = vmatprep.subr.mxu0 0.0
    %148 = vmatpush1.msra.mxu0 %v37
    %149 = vmatprep.subr.mxu0 0.0
    %150 = vmatpush1.msra.mxu0 %v38
    %151 = vmatprep.subr.mxu0 0.0
    %152 = vmatpush1.msra.mxu0 %v39
    %153 = vmatprep.subr.mxu0 0.0
    %154 = vmatpush1.msra.mxu0 %v40
    %155 = vmatprep.subr.mxu0 0.0
    %156 = vmatpush1.msra.mxu0 %v41
    %157 = vmatprep.subr.mxu0 0.0
    %158 = vmatpush1.msra.mxu0 %v42
    %159 = vmatprep.subr.mxu0 0.0
    %160 = vmatpush1.msra.mxu0 %v43
    %161 = vmatprep.subr.mxu0 0.0
    %162 = vmatpush1.msra.mxu0 0.0
    %163 = vmatprep.subr.mxu0 0.0
    %164 = vmatpush1.msra.mxu0 0.0
    %165 = vmatprep.subr.mxu0 0.0
    %166 = vmatpush1.msra.mxu0 0.0
    %167 = vmatprep.subr.mxu0 0.0
    %168 = vmatpush1.msra.mxu0 0.0
    %169 = vmatprep.subr.mxu0 0.0
    %170 = vmatpush1.msra.mxu0 0.0
    %171 = vmatprep.subr.mxu0 0.0
    %172 = vmatpush1.msra.mxu0 0.0
    %173 = vmatprep.subr.mxu0 0.0
    %174 = vmatpush1.msra.mxu0 0.0
    %175 = vmatprep.subr.mxu0 0.0
    %176 = vmatpush1.msra.mxu0 0.0
    %177 = vmatprep.subr.mxu0 0.0
    %178 = vmatpush1.msra.mxu0 0.0
    %179 = vmatprep.subr.mxu0 0.0
    %180 = vmatpush1.msra.mxu0 0.0
    %181 = vmatprep.subr.mxu0 0.0
    %182 = vmatpush1.msra.mxu0 0.0
    %183 = vmatprep.subr.mxu0 0.0
    %184 = vmatpush1.msra.mxu0 0.0
    %185 = vmatprep.subr.mxu0 0.0
    %186 = vmatpush1.msra.mxu0 0.0
    %187 = vmatprep.subr.mxu0 0.0
    %188 = vmatpush1.msra.mxu0 0.0
    %189 = vmatprep.subr.mxu0 0.0
    %190 = vmatpush1.msra.mxu0 0.0
    %191 = vmatprep.subr.mxu0 0.0
    %192 = vmatpush1.msra.mxu0 0.0
    %193 = vmatprep.mubr.f32.mxu0 0.0
    %194 = vmatmul.mubr.f32.gmra.mrb[0].mxu0 %v124
    %v195 = vpop.f32.mrb[0].mxu0
    %v196 = vadd.f32 %v128, %v195
    %v197 = vpop.f32.mrb[0].mxu0
    %198 = vdwg.mxu0
    %199 = vst [vmem:[%s2] sm:$0xff] %v196
    // Predicated region
    $region14: #{linear_qnet_forward.1} parent=1 // pred_check
      _
    $region15: #{linear_qnet_forward.1} parent=1 // pred_check_branch
      %201 = sbr.rel (0) target = $region17
    $region16: #{linear_qnet_forward.1} parent=1 // pred_region
      _
    $region17: #{linear_qnet_forward.1} parent=1 // pred_fallthru
      _
    // Predicated region
    $region18: #{linear_qnet_forward.1} parent=1 // pred_check
      _
    $region19: #{linear_qnet_forward.1} parent=1 // pred_check_branch
      %203 = sbr.rel (0) target = $region21
    $region20: #{linear_qnet_forward.1} parent=1 // pred_region
      _
    $region21: #{linear_qnet_forward.1} parent=1 // pred_fallthru
      _
    %204 = vsyncpa [#allocation3], 1

</llo_original>
